<compile_context>
chip_gen: v7x
topology: tpu7x:2x2x1
jax: 0.10.0
libtpu: 0.0.40
codegen_flags: <defaults>
</compile_context>

<pallas_src>
import jax
import jax.numpy as jnp
from jax.experimental import pallas as pl
from jax.experimental.pallas import tpu as pltpu

_LANE = 128
_SUBLANE = 8
# Double-buffered VMEM working-set target; comfortably under v7x's 64 MiB physical
# VMEM and usable on v5e/v6e once vmem_limit_bytes is raised to match.
_VMEM_BUDGET = 20 * 1024 * 1024


def _round_up(n: int, m: int) -> int:
    return -(-n // m) * m


def _pick_batch_tile(batch: int) -> int:
    """Largest batch tile with <= ~12.5% padding waste (multiple of 8)."""
    batch8 = _round_up(batch, _SUBLANE)
    slack = max(batch8 // 8, 1)
    for tm in (512, 256, 128, 64, 32, 16, 8):
        if _round_up(batch, tm) <= batch8 + slack:
            return tm
    return _SUBLANE


def _divisor_tiles(dim_p: int):
    """Lane-aligned tile sizes that divide the (128-padded) dim exactly."""
    cands = [c for c in (1024, 512, 384, 256, 128) if c <= dim_p and dim_p % c == 0]
    return cands or [dim_p]


def _select_tiles(batch: int, din_p: int, dout_p: int, budget: int = _VMEM_BUDGET):
    """Pick (tm, tk, tn, batch_p) minimizing modeled HBM traffic under a VMEM budget.

    Traffic model matches the grid ordering (n, batch, k) used below:
      - x is streamed once per N tile,
      - the weight is streamed once iff the full K fits (kt == 1), otherwise once
        per batch tile (the case the review flagged),
      - the output is written once.
    """
    tm_cands, t = [], _pick_batch_tile(batch)
    while t >= _SUBLANE:
        tm_cands.append(t)
        t //= 2
    tn_cands = _divisor_tiles(dout_p)
    tk_cands = [din_p] + [c for c in _divisor_tiles(din_p) if c != din_p]

    best_key, best = None, None
    for tm in tm_cands:
        batch_p = _round_up(batch, tm)
        bt = batch_p // tm
        for tk in tk_cands:
            kt = din_p // tk
            for tn in tn_cands:
                nt = dout_p // tn
                # two pipeline buffers per operand, f32; bias sublane-padded to 8.
                ws = 2 * 4 * (tm * tk + tk * tn + tm * tn + 8 * tn)
                if ws > budget:
                    continue
                w_streams = 1 if kt == 1 else bt
                traffic = (nt * batch_p * din_p
                           + w_streams * din_p * dout_p
                           + batch_p * dout_p)
                steps = nt * bt * kt
                key = (traffic, steps, -tm, -tn, -tk)
                if best_key is None or key < best_key:
                    best_key, best = key, (tm, tk, tn, batch_p)
    if best is None:  # degenerate fallback
        tm, tk, tn = _SUBLANE, min(_LANE, din_p), min(_LANE, dout_p)
        best = (tm, tk, tn, _round_up(batch, tm))
    return best


def _linear_kernel(x_ref, w_ref, b_ref, o_ref):
    # x_ref: (TM, TK)   activation tile
    # w_ref: (TK, TN)   transposed weight tile (K-major, MXU-native)
    # b_ref: (1,  TN)   bias tile
    # o_ref: (TM, TN)   output tile; VMEM-resident across the K axis (k innermost),
    #                   so it doubles as the accumulator — no f32 scratch needed.
    k = pl.program_id(2)
    part = jnp.dot(x_ref[...], w_ref[...], preferred_element_type=jnp.float32)

    @pl.when(k == 0)
    def _():
        o_ref[...] = (part + b_ref[...]).astype(o_ref.dtype)

    @pl.when(k > 0)
    def _():
        # TODO(synk): if the output dtype is ever narrower than f32 with a tiled K
        # axis, switch back to an f32 VMEM scratch accumulator for this path.
        o_ref[...] += part.astype(o_ref.dtype)


def linear_forward(x, weight, bias):
    """y = x @ weight.T + bias (PyTorch nn.Linear semantics).

    x:      [batch, input_dim]        float32
    weight: [output_dim, input_dim]   (PyTorch layout; transposed once here)
    bias:   [output_dim]
    """
    batch, input_dim = x.shape
    output_dim = weight.shape[0]

    din_p = _round_up(input_dim, _LANE)
    dout_p = _round_up(output_dim, _LANE)
    tm, tk, tn, batch_p = _select_tiles(batch, din_p, dout_p)
    nt, bt, kt = dout_p // tn, batch_p // tm, din_p // tk

    # ---- one-time layout prep: transpose weight to [K, N], zero-pad all ----------
    x_p = x
    if (batch_p, din_p) != (batch, input_dim):
        x_p = jnp.pad(x, ((0, batch_p - batch), (0, din_p - input_dim)))
    w_t = weight.T  # [input_dim, output_dim] — contiguous, K-major for the MXU
    if (din_p, dout_p) != (input_dim, output_dim):
        w_t = jnp.pad(w_t, ((0, din_p - input_dim), (0, dout_p - output_dim)))
    b_p = bias if dout_p == output_dim else jnp.pad(bias, (0, dout_p - output_dim))
    b_p = b_p.reshape(1, dout_p)

    # ---- VMEM / cost bookkeeping --------------------------------------------------
    working_set = 2 * 4 * (tm * tk + tk * tn + tm * tn + 8 * tn)
    vmem_limit = min(max(2 * working_set + (1 << 20), 16 << 20), 48 << 20)
    w_streams = 1 if kt == 1 else bt  # actual weight HBM re-stream factor
    cost = pl.CostEstimate(
        flops=2 * batch_p * din_p * dout_p,
        transcendentals=0,
        bytes_accessed=4 * (nt * batch_p * din_p
                            + w_streams * din_p * dout_p
                            + batch_p * dout_p
                            + dout_p),
    )

    # Grid ordering (n, batch, k): k innermost so the output block is revisited
    # consecutively (accumulation into o_ref is valid); batch inner relative to n so
    # the weight/bias block indices are constant across batch tiles (single DMA when
    # kt == 1 — true residency).
    out_padded = pl.pallas_call(
        _linear_kernel,
        out_shape=jax.ShapeDtypeStruct((batch_p, dout_p), x.dtype),
        grid_spec=pltpu.PrefetchScalarGridSpec(
            num_scalar_prefetch=0,
            grid=(nt, bt, kt),
            in_specs=[
                pl.BlockSpec((tm, tk), lambda n, i, k: (i, k)),   # x tile
                pl.BlockSpec((tk, tn), lambda n, i, k: (k, n)),   # weight tile (resident over batch)
                pl.BlockSpec((1, tn), lambda n, i, k: (0, n)),    # bias tile
            ],
            out_specs=pl.BlockSpec((tm, tn), lambda n, i, k: (i, n)),
        ),
        compiler_params=pltpu.CompilerParams(
            dimension_semantics=("parallel", "parallel", "arbitrary"),
            vmem_limit_bytes=vmem_limit,
        ),
        cost_estimate=cost,
    )(x_p, w_t, b_p)

    # Strip batch / lane padding back to the logical shape.
    return out_padded[:batch, :output_dim]


if __name__ == "__main__":
    # Small shapes consistent with the module's forward: x [batch, input_dim].
    batch, input_dim, output_dim = 8, 32, 16

    key = jax.random.PRNGKey(0)
    kx, kw, kb = jax.random.split(key, 3)

    x = jax.random.normal(kx, (batch, input_dim), dtype=jnp.float32)
    # Deterministic parameter init (mimicking nn.Linear's uniform init range),
    # kept in PyTorch [output_dim, input_dim] layout.
    bound = 1.0 / (input_dim ** 0.5)
    weight = jax.random.uniform(kw, (output_dim, input_dim),
                                minval=-bound, maxval=bound, dtype=jnp.float32)
    bias = jax.random.uniform(kb, (output_dim,),
                              minval=-bound, maxval=bound, dtype=jnp.float32)

    y = linear_forward(x, weight, bias)
    jax.block_until_ready(y)

    # Cross-check against plain-JAX reference.
    y_ref = x @ weight.T + bias
    assert y.shape == (batch, output_dim)
    assert jnp.allclose(y, y_ref, atol=1e-5, rtol=1e-5), (
        float(jnp.max(jnp.abs(y - y_ref))))

    print("KERNEL_OK")
</pallas_src>

<mosaic_0001>
module attributes {stable_mosaic.version = 11 : i64} {
  func.func @_linear_kernel(%arg0: i32, %arg1: i32, %arg2: i32, %arg3: memref<8x128xf32, #tpu.memory_space<vmem>>, %arg4: memref<128x128xf32, #tpu.memory_space<vmem>>, %arg5: memref<1x128xf32, #tpu.memory_space<vmem>>, %arg6: memref<8x128xf32, #tpu.memory_space<vmem>>) attributes {dimension_semantics = [#tpu.dimension_semantics<parallel>, #tpu.dimension_semantics<parallel>, #tpu.dimension_semantics<arbitrary>], iteration_bounds = array<i64: 1, 1, 1>, scalar_prefetch = 0 : i64, scratch_operands = 0 : i64, tpu.core_type = #tpu.core_type<tc>, window_params = [{transform_indices = @transform_0, window_bounds = array<i64: 8, 128>}, {transform_indices = @transform_1, window_bounds = array<i64: 128, 128>}, {transform_indices = @transform_2, window_bounds = array<i64: 1, 128>}, {transform_indices = @transform_3, window_bounds = array<i64: 8, 128>}]} {
    %c0 = arith.constant 0 : index
    %c0_0 = arith.constant 0 : index
    %0 = vector.load %arg3[%c0, %c0_0] : memref<8x128xf32, #tpu.memory_space<vmem>>, vector<8x128xf32>
    %c0_1 = arith.constant 0 : index
    %c0_2 = arith.constant 0 : index
    %1 = vector.load %arg4[%c0_1, %c0_2] : memref<128x128xf32, #tpu.memory_space<vmem>>, vector<128x128xf32>
    %cst = arith.constant dense<0.000000e+00> : vector<8x128xf32>
    %2 = tpu.matmul %0, %1, %cst {dimension_numbers = #tpu.dot_dimension_numbers<[1], [0], [0], [1], [0, 0, 1, 1], [], []>} : vector<8x128xf32>, vector<128x128xf32>, vector<8x128xf32> -> vector<8x128xf32>
    %c0_i32 = arith.constant 0 : i32
    %3 = arith.cmpi eq, %arg2, %c0_i32 : i32
    %4 = arith.extui %3 : i1 to i32
    %c0_i32_3 = arith.constant 0 : i32
    %5 = arith.cmpi ne, %4, %c0_i32_3 : i32
    scf.if %5 {
      %c0_6 = arith.constant 0 : index
      %c0_7 = arith.constant 0 : index
      %9 = vector.load %arg5[%c0_6, %c0_7] : memref<1x128xf32, #tpu.memory_space<vmem>>, vector<1x128xf32>
      %10 = vector.broadcast %9 : vector<1x128xf32> to vector<8x128xf32>
      %11 = arith.addf %2, %10 : vector<8x128xf32>
      %c0_8 = arith.constant 0 : index
      %c0_9 = arith.constant 0 : index
      %12 = vector.load %arg6[%c0_8, %c0_9] : memref<8x128xf32, #tpu.memory_space<vmem>>, vector<8x128xf32>
      tpu.vector_store %arg6[%c0_8, %c0_9], %11 {strides = array<i32>} : memref<8x128xf32, #tpu.memory_space<vmem>>, vector<8x128xf32>,
    } else {
    }
    %c0_i32_4 = arith.constant 0 : i32
    %6 = arith.cmpi sgt, %arg2, %c0_i32_4 : i32
    %7 = arith.extui %6 : i1 to i32
    %c0_i32_5 = arith.constant 0 : i32
    %8 = arith.cmpi ne, %7, %c0_i32_5 : i32
    scf.if %8 {
      %c0_6 = arith.constant 0 : index
      %c0_7 = arith.constant 0 : index
      %9 = vector.load %arg6[%c0_6, %c0_7] : memref<8x128xf32, #tpu.memory_space<vmem>>, vector<8x128xf32>
      %10 = arith.addf %9, %2 : vector<8x128xf32>
      %c0_8 = arith.constant 0 : index
      %c0_9 = arith.constant 0 : index
      %11 = vector.load %arg6[%c0_8, %c0_9] : memref<8x128xf32, #tpu.memory_space<vmem>>, vector<8x128xf32>
      tpu.vector_store %arg6[%c0_8, %c0_9], %10 {strides = array<i32>} : memref<8x128xf32, #tpu.memory_space<vmem>>, vector<8x128xf32>,
    } else {
    }
    return
  }
  func.func @transform_0(%arg0: i32, %arg1: i32, %arg2: i32) -> (i32, i32) {
    %c0_i32 = arith.constant 0 : i32
    return %arg1, %arg2 : i32, i32
  }
  func.func @transform_1(%arg0: i32, %arg1: i32, %arg2: i32) -> (i32, i32) {
    %c0_i32 = arith.constant 0 : i32
    return %arg2, %arg0 : i32, i32
  }
  func.func @transform_2(%arg0: i32, %arg1: i32, %arg2: i32) -> (i32, i32) {
    %c0_i32 = arith.constant 0 : i32
    %c0_i32_0 = arith.constant 0 : i32
    return %c0_i32, %arg0 : i32, i32
  }
  func.func @transform_3(%arg0: i32, %arg1: i32, %arg2: i32) -> (i32, i32) {
    %c0_i32 = arith.constant 0 : i32
    return %arg1, %arg0 : i32, i32
  }
}

</mosaic_0001>

<llo_original>
// kernel: tpu_custom_call.1
$region0: #{tpu_custom_call.1}
  #allocation0 [shape = 'u32[]', space=smem, size = 0x4, offset = 0x4, fixed_abs, tag = 'smem constant byte address 0x4 - core index']
  #allocation1 [shape = 'u32[144,128]{1,0:T(1,128)}', space=vmem, size = 0x12000, scoped, tag = 'internal scratch']
  %s0 = inlined_call_operand.hbm [shape: f32[8,128], index: 0, kind: input, shape index: {}]
  %s1 = inlined_call_operand.hbm [shape: f32[128,128], index: 1, kind: input, shape index: {}]
  %s2 = inlined_call_operand.vmem [shape: f32[1,128], index: 2, kind: input, shape index: {}]
  %s3 = inlined_call_operand.hbm [shape: f32[8,128], index: 3, kind: output, shape index: {}]
  %s4 = sld [smem:[#allocation0]]
  $region38: #{tpu_custom_call.1} parent=0
    _
  %s6 = ssub.s32 1, %s4
  %s7 = scalar_select 0, %s6, %s4
  $region1: #{tpu_custom_call.1} parent=0
    #allocation2 [shape = 'u8[4096]{0}', space=vmem, size = 0x1000, scoped, tag = 'input window, operand 0, single buffered']
    #allocation3 [shape = 's32[1]{0}', space=sflag, size = 0x4, scoped, tag = 'scoped memory for tpu_custom_call.1']
    #allocation4 [shape = 's32[1]{0}', space=sflag, size = 0x4, scoped, tag = 'scoped memory for tpu_custom_call.1']
    #allocation5 [shape = 'u8[65536]{0}', space=vmem, size = 0x10000, scoped, tag = 'input window, operand 1, single buffered']
    #allocation6 [shape = 's32[1]{0}', space=sflag, size = 0x4, scoped, tag = 'scoped memory for tpu_custom_call.1']
    #allocation7 [shape = 'u8[4096]{0}', space=vmem, size = 0x1000, scoped, tag = 'output window, operand 0, single buffered']
    %8 = vsyncpa [#allocation3], 0
    %9 = vsyncpa [#allocation6], 0
    %10 = vsyncpa [#allocation4], 0
    // Predicated region
    $region2: #{tpu_custom_call.1} parent=1 // pred_check
      _
    $region3: #{tpu_custom_call.1} parent=1 // pred_check_branch
      %12 = sbr.rel (0) target = $region5
    $region4: #{tpu_custom_call.1} parent=1 // pred_region
      %s14 = ssub.s32 128, 128
      %15 = vsyncadd [#allocation3], %s14
      %s17 = sshll.u32 [#allocation2], 4
      %s18 = int_to_ptr.vmem [resolvable:$true] %s17
      %20 = dma.hbm_to_vmem [thread:$0]  %s0, 128, %s18, [#allocation3]
    $region5: #{tpu_custom_call.1} parent=1 // pred_fallthru
      _
    // Predicated region
    $region6: #{tpu_custom_call.1} parent=1 // pred_check
      _
    $region7: #{tpu_custom_call.1} parent=1 // pred_check_branch
      %22 = sbr.rel (0) target = $region9
    $region8: #{tpu_custom_call.1} parent=1 // pred_region
      %s24 = ssub.s32 2048, 2048
      %25 = vsyncadd [#allocation6], %s24
      %s26 = sshll.u32 [#allocation5], 4
      %s27 = int_to_ptr.vmem [resolvable:$true] %s26
      %32 = dma.hbm_to_vmem [thread:$0]  %s1, 2048, %s27, [#allocation6], 128, 128, 8
    $region9: #{tpu_custom_call.1} parent=1 // pred_fallthru
      _
    // Predicated region
    $region10: #{tpu_custom_call.1} parent=1 // pred_check
      _
    $region11: #{tpu_custom_call.1} parent=1 // pred_check_branch
      %34 = sbr.rel (0) target = $region13
    $region12: #{tpu_custom_call.1} parent=1 // pred_region
      _
    $region13: #{tpu_custom_call.1} parent=1 // pred_fallthru
      _
    // Predicated region
    $region14: #{tpu_custom_call.1} parent=1 // pred_check
      _
    $region15: #{tpu_custom_call.1} parent=1 // pred_check_branch
      %36 = sbr.rel (0) target = $region17
    $region16: #{tpu_custom_call.1} parent=1 // pred_region
      %37 = dma.done [#allocation3], 128
    $region17: #{tpu_custom_call.1} parent=1 // pred_fallthru
      _
    // Predicated region
    $region18: #{tpu_custom_call.1} parent=1 // pred_check
      _
    $region19: #{tpu_custom_call.1} parent=1 // pred_check_branch
      %39 = sbr.rel (0) target = $region21
    $region20: #{tpu_custom_call.1} parent=1 // pred_region
      %40 = dma.done [#allocation6], 2048
    $region21: #{tpu_custom_call.1} parent=1 // pred_fallthru
      _
    %v41 = vld [vmem:[#allocation2] sm:$0xff]
    %v42 = vld [vmem:[#allocation5] sm:$0xff]
    %v43 = vld [vmem:[#allocation5 + $0x8] sm:$0xff]
    %v44 = vld [vmem:[#allocation5 + $0x10] sm:$0xff]
    %v45 = vld [vmem:[#allocation5 + $0x18] sm:$0xff]
    %v46 = vld [vmem:[#allocation5 + $0x20] sm:$0xff]
    %v47 = vld [vmem:[#allocation5 + $0x28] sm:$0xff]
    %v48 = vld [vmem:[#allocation5 + $0x30] sm:$0xff]
    %v49 = vld [vmem:[#allocation5 + $0x38] sm:$0xff]
    %v50 = vld [vmem:[#allocation5 + $0x40] sm:$0xff]
    %v51 = vld [vmem:[#allocation5 + $0x48] sm:$0xff]
    %v52 = vld [vmem:[#allocation5 + $0x50] sm:$0xff]
    %v53 = vld [vmem:[#allocation5 + $0x58] sm:$0xff]
    %v54 = vld [vmem:[#allocation5 + $0x60] sm:$0xff]
    %v55 = vld [vmem:[#allocation5 + $0x68] sm:$0xff]
    %v56 = vld [vmem:[#allocation5 + $0x70] sm:$0xff]
    %v57 = vld [vmem:[#allocation5 + $0x78] sm:$0xff]
    %58 = vmatprep.subr.mxu0 0.0
    %59 = vmatpush1.msra.mxu0 %v42
    %60 = vmatprep.subr.mxu0 0.0
    %61 = vmatpush1.msra.mxu0 %v43
    %62 = vmatprep.subr.mxu0 0.0
    %63 = vmatpush1.msra.mxu0 %v44
    %64 = vmatprep.subr.mxu0 0.0
    %65 = vmatpush1.msra.mxu0 %v45
    %66 = vmatprep.subr.mxu0 0.0
    %67 = vmatpush1.msra.mxu0 %v46
    %68 = vmatprep.subr.mxu0 0.0
    %69 = vmatpush1.msra.mxu0 %v47
    %70 = vmatprep.subr.mxu0 0.0
    %71 = vmatpush1.msra.mxu0 %v48
    %72 = vmatprep.subr.mxu0 0.0
    %73 = vmatpush1.msra.mxu0 %v49
    %74 = vmatprep.subr.mxu0 0.0
    %75 = vmatpush1.msra.mxu0 %v50
    %76 = vmatprep.subr.mxu0 0.0
    %77 = vmatpush1.msra.mxu0 %v51
    %78 = vmatprep.subr.mxu0 0.0
    %79 = vmatpush1.msra.mxu0 %v52
    %80 = vmatprep.subr.mxu0 0.0
    %81 = vmatpush1.msra.mxu0 %v53
    %82 = vmatprep.subr.mxu0 0.0
    %83 = vmatpush1.msra.mxu0 %v54
    %84 = vmatprep.subr.mxu0 0.0
    %85 = vmatpush1.msra.mxu0 %v55
    %86 = vmatprep.subr.mxu0 0.0
    %87 = vmatpush1.msra.mxu0 %v56
    %88 = vmatprep.subr.mxu0 0.0
    %89 = vmatpush1.msra.mxu0 %v57
    %90 = vmatprep.subr.mxu0 0.0
    %91 = vmatpush1.msra.mxu0 0.0
    %92 = vmatprep.subr.mxu0 0.0
    %93 = vmatpush1.msra.mxu0 0.0
    %94 = vmatprep.subr.mxu0 0.0
    %95 = vmatpush1.msra.mxu0 0.0
    %96 = vmatprep.subr.mxu0 0.0
    %97 = vmatpush1.msra.mxu0 0.0
    %98 = vmatprep.subr.mxu0 0.0
    %99 = vmatpush1.msra.mxu0 0.0
    %100 = vmatprep.subr.mxu0 0.0
    %101 = vmatpush1.msra.mxu0 0.0
    %102 = vmatprep.subr.mxu0 0.0
    %103 = vmatpush1.msra.mxu0 0.0
    %104 = vmatprep.subr.mxu0 0.0
    %105 = vmatpush1.msra.mxu0 0.0
    %106 = vmatprep.subr.mxu0 0.0
    %107 = vmatpush1.msra.mxu0 0.0
    %108 = vmatprep.subr.mxu0 0.0
    %109 = vmatpush1.msra.mxu0 0.0
    %110 = vmatprep.subr.mxu0 0.0
    %111 = vmatpush1.msra.mxu0 0.0
    %112 = vmatprep.subr.mxu0 0.0
    %113 = vmatpush1.msra.mxu0 0.0
    %114 = vmatprep.subr.mxu0 0.0
    %115 = vmatpush1.msra.mxu0 0.0
    %116 = vmatprep.subr.mxu0 0.0
    %117 = vmatpush1.msra.mxu0 0.0
    %118 = vmatprep.subr.mxu0 0.0
    %119 = vmatpush1.msra.mxu0 0.0
    %120 = vmatprep.subr.mxu0 0.0
    %121 = vmatpush1.msra.mxu0 0.0
    %122 = vmatprep.mubr.f32.mxu0 0.0
    %123 = vmatmul.mubr.f32.gmra.mrb[0].mxu0 %v41
    %v124 = vpop.f32.mrb[0].mxu0
    %v125 = vadd.f32 0.0, %v124
    %v126 = vpop.f32.mrb[0].mxu0
    %127 = vdwg.mxu0
    %p128 = scmp.eq.s32.totalorder 0, 0
    // Predicated region
    $region22: #{tpu_custom_call.1} parent=1 // pred_check
      %p129 = pneg %p128
    $region23: #{tpu_custom_call.1} parent=1 // pred_check_branch
      %131 = sbr.rel (%p129) target = $region25
    $region24: #{tpu_custom_call.1} parent=1 // pred_region
      %v132 = vld [vmem:[%s2] sm:$0x1]
      %v134 = vlaneseq
      %v135 = vshrl.u32 %v134, 7
      %v136 = vsub.s32 0, %v135
      %v137 = vrot.slane %v132, %v136
      %v139 = vadd.f32 %v125, %v137
      %140 = vst [vmem:[#allocation7] sm:$0xff] %v139
    $region25: #{tpu_custom_call.1} parent=1 // pred_fallthru
      _
    %p141 = scmp.gt.s32.totalorder 0, 0
    // Predicated region
    $region26: #{tpu_custom_call.1} parent=1 // pred_check
      %p142 = pneg %p141
    $region27: #{tpu_custom_call.1} parent=1 // pred_check_branch
      %144 = sbr.rel (%p142) target = $region29
    $region28: #{tpu_custom_call.1} parent=1 // pred_region
      %v145 = vld [vmem:[#allocation7] sm:$0xff]
      %v146 = vadd.f32 %v145, %v125
      %147 = vst [vmem:[#allocation7] sm:$0xff] %v146
    $region29: #{tpu_custom_call.1} parent=1 // pred_fallthru
      _
    // Predicated region
    $region30: #{tpu_custom_call.1} parent=1 // pred_check
      _
    $region31: #{tpu_custom_call.1} parent=1 // pred_check_branch
      %149 = sbr.rel (0) target = $region33
    $region32: #{tpu_custom_call.1} parent=1 // pred_region
      %s151 = ssub.s32 128, 128
      %152 = vsyncadd [#allocation4], %s151
      %s154 = sshll.u32 [#allocation7], 4
      %s155 = int_to_ptr.vmem [resolvable:$true] %s154
      %157 = dma.vmem_to_hbm [thread:$0]  %s155, 128, %s3, [#allocation4]
    $region33: #{tpu_custom_call.1} parent=1 // pred_fallthru
      _
    // Predicated region
    $region34: #{tpu_custom_call.1} parent=1 // pred_check
      _
    $region35: #{tpu_custom_call.1} parent=1 // pred_check_branch
      %159 = sbr.rel (0) target = $region37
    $region36: #{tpu_custom_call.1} parent=1 // pred_region
      %160 = dma.done [#allocation4], 128
    $region37: #{tpu_custom_call.1} parent=1 // pred_fallthru
      _
    %161 = vsyncpa [#allocation3], 1
    %162 = vsyncpa [#allocation6], 1
    %163 = vsyncpa [#allocation4], 1

</llo_original>
